<compile_context>
chip_gen: v7x
topology: tpu7x:2x2x1
jax: 0.10.0
libtpu: 0.0.40
codegen_flags: <defaults>
</compile_context>

<pallas_src>
import math

import jax
import jax.numpy as jnp
from jax.experimental import pallas as pl
from jax.experimental.pallas import tpu as pltpu


LANE = 128


def _round_up(x, m):
    return (x + m - 1) // m * m


def _pad_axis(a, axis, new_size):
    pad = new_size - a.shape[axis]
    if pad == 0:
        return a
    widths = [(0, 0)] * a.ndim
    widths[axis] = (0, pad)
    return jnp.pad(a, widths)


def _vmem_limit_bytes(block_shapes, itemsize=4):
    """Double-buffered block footprint + headroom, capped to fit v7x's 64 MiB VMEM."""
    need = 2 * sum(math.prod(s) for s in block_shapes) * itemsize
    return int(min(max(need + (8 << 20), 16 << 20), 48 << 20))


# ------------- Stage 1: z = x @ W1t ; per-tile partial BN statistics ---------
def _stage1_kernel(x_ref, w1t_ref, stat_ref):
    z = jnp.dot(x_ref[...], w1t_ref[...], preferred_element_type=jnp.float32)
    s1 = jnp.sum(z, axis=0, keepdims=True)        # (1, D1)  per-channel sum
    s2 = jnp.sum(z * z, axis=0, keepdims=True)    # (1, D1)  per-channel sum of squares
    stat_ref[...] = jnp.concatenate([s1, s2], axis=0)[None, :, :]


# ------------- Stage 2: recompute z, fused BN scale/shift + ReLU + W2 --------
def _stage2_kernel(x_ref, w1t_ref, scale_ref, shift_ref, w2t_ref, b2_ref, y_ref):
    z = jnp.dot(x_ref[...], w1t_ref[...], preferred_element_type=jnp.float32)
    hr = jnp.maximum(z * scale_ref[...] + shift_ref[...], 0.0)
    y = jnp.dot(hr.astype(w2t_ref.dtype), w2t_ref[...],
                preferred_element_type=jnp.float32)
    y_ref[...] = y + b2_ref[...]


def mlp2d_forward(x_nchw, params, *, tile_m=512, eps=1e-5,
                  compute_dtype=jnp.float32):
    """MLP2d forward: conv1x1 -> BatchNorm2d(training) -> ReLU -> conv1x1.

    compute_dtype controls the matmul *input* dtype (accumulation stays f32);
    pass jnp.bfloat16 on v6e/v7x to halve HBM traffic on this mem-bound path.
    """
    w1, gamma, beta, w2, b2 = (params[k] for k in
                               ("w1", "gamma", "beta", "w2", "b2"))
    # NOTE: params["b1"] is intentionally unused -- a bias preceding training-mode
    # BatchNorm is exactly absorbed by the mean subtraction (variance unchanged).

    N, Cin, H, W = x_nchw.shape
    D1 = w1.shape[0]   # inner_dim
    D2 = w2.shape[0]   # out_dim
    M = N * H * W

    # TODO(synk): keeping the model channels-last end-to-end would remove these
    # two full-tensor layout transposes (one extra HBM pass over x and over y).
    x = jnp.transpose(x_nchw, (0, 2, 3, 1)).reshape(M, Cin)

    # Pre-transpose weights once (hoisted out of the kernels).
    w1t = jnp.transpose(w1)     # (Cin, D1)
    w2t = jnp.transpose(w2)     # (D1, D2)

    # Lane-dense padding of channel dims; M padded to a tile_m multiple.
    Cin_p = _round_up(Cin, LANE)
    D1_p = _round_up(D1, LANE)
    D2_p = _round_up(D2, LANE)
    tile_m = max(8, min(tile_m, _round_up(M, 8)))
    M_p = _round_up(M, tile_m)
    grid_m = M_p // tile_m

    x_p = _pad_axis(_pad_axis(x.astype(compute_dtype), 1, Cin_p), 0, M_p)
    w1t_p = _pad_axis(_pad_axis(w1t.astype(compute_dtype), 0, Cin_p), 1, D1_p)
    w2t_p = _pad_axis(_pad_axis(w2t.astype(compute_dtype), 0, D1_p), 1, D2_p)
    gamma_p = _pad_axis(gamma.astype(jnp.float32), 0, D1_p)
    beta_p = _pad_axis(beta.astype(jnp.float32), 0, D1_p)
    b2_p = _pad_axis(b2.astype(jnp.float32), 0, D2_p).reshape(1, D2_p)

    isz = max(jnp.dtype(compute_dtype).itemsize, 4)

    # ---------------- Stage 1: per-tile partial BN statistics ----------------
    stats = pl.pallas_call(
        _stage1_kernel,
        out_shape=jax.ShapeDtypeStruct((grid_m, 2, D1_p), jnp.float32),
        grid_spec=pltpu.PrefetchScalarGridSpec(
            num_scalar_prefetch=0,
            grid=(grid_m,),
            in_specs=[
                pl.BlockSpec((tile_m, Cin_p), lambda i: (i, 0)),
                pl.BlockSpec((Cin_p, D1_p), lambda i: (0, 0)),
            ],
            out_specs=pl.BlockSpec((1, 2, D1_p), lambda i: (i, 0, 0)),
        ),
        compiler_params=pltpu.CompilerParams(
            dimension_semantics=("parallel",),
            vmem_limit_bytes=_vmem_limit_bytes(
                [(tile_m, Cin_p), (Cin_p, D1_p), (2, D1_p)], itemsize=isz)),
    )(x_p, w1t_p)

    # -------- BN glue: fold to a single per-channel scale/shift (tiny) -------
    totals = jnp.sum(stats, axis=0)                    # (2, D1_p)
    mean = totals[0] / M                               # true M, not padded M
    var = totals[1] / M - mean * mean                  # biased variance (BN training)
    inv_std = jax.lax.rsqrt(var + eps)
    scale = (gamma_p * inv_std).reshape(1, D1_p)
    shift = (beta_p - mean * gamma_p * inv_std).reshape(1, D1_p)

    # ------------- Stage 2: recompute z, BN affine + ReLU + linear2 ----------
    y_p = pl.pallas_call(
        _stage2_kernel,
        out_shape=jax.ShapeDtypeStruct((M_p, D2_p), jnp.float32),
        grid_spec=pltpu.PrefetchScalarGridSpec(
            num_scalar_prefetch=0,
            grid=(grid_m,),
            in_specs=[
                pl.BlockSpec((tile_m, Cin_p), lambda i: (i, 0)),
                pl.BlockSpec((Cin_p, D1_p), lambda i: (0, 0)),
                pl.BlockSpec((1, D1_p), lambda i: (0, 0)),
                pl.BlockSpec((1, D1_p), lambda i: (0, 0)),
                pl.BlockSpec((D1_p, D2_p), lambda i: (0, 0)),
                pl.BlockSpec((1, D2_p), lambda i: (0, 0)),
            ],
            out_specs=pl.BlockSpec((tile_m, D2_p), lambda i: (i, 0)),
        ),
        compiler_params=pltpu.CompilerParams(
            dimension_semantics=("parallel",),
            vmem_limit_bytes=_vmem_limit_bytes(
                [(tile_m, Cin_p), (Cin_p, D1_p), (1, D1_p), (1, D1_p),
                 (D1_p, D2_p), (1, D2_p), (tile_m, D2_p)], itemsize=isz)),
    )(x_p, w1t_p, scale, shift, w2t_p, b2_p)

    y = y_p[:M, :D2]
    return jnp.transpose(y.reshape(N, H, W, D2), (0, 3, 1, 2))


def mlp2d_reference(x_nchw, params, eps=1e-5):
    """Pure-JAX reference matching PyTorch MLP2d (BN in training mode)."""
    w1, b1, gamma, beta, w2, b2 = (params[k] for k in
                                   ("w1", "b1", "gamma", "beta", "w2", "b2"))
    N, Cin, H, W = x_nchw.shape
    x = jnp.transpose(x_nchw, (0, 2, 3, 1)).reshape(-1, Cin).astype(jnp.float32)
    h = x @ w1.T + b1
    mean = h.mean(axis=0)
    var = ((h - mean) ** 2).mean(axis=0)   # biased, as used by BN forward
    hn = (h - mean) / jnp.sqrt(var + eps) * gamma + beta
    hr = jnp.maximum(hn, 0.0)
    y = hr @ w2.T + b2
    return jnp.transpose(y.reshape(N, H, W, w2.shape[0]), (0, 3, 1, 2))


if __name__ == "__main__":
    # Small shapes consistent with MLP2d(in_dim=4, inner_dim=32, out_dim=16).
    N, Cin, H, W = 2, 4, 16, 16
    inner_dim, out_dim = 32, 16

    key = jax.random.PRNGKey(0)
    kx, kw1, kb1, kw2, kb2 = jax.random.split(key, 5)

    x = jax.random.normal(kx, (N, Cin, H, W), dtype=jnp.float32)

    params = {
        # conv1x1 weights (out, in) -- the trailing 1x1 spatial dims are dropped.
        "w1": jax.random.normal(kw1, (inner_dim, Cin), dtype=jnp.float32) * 0.1,
        "b1": jax.random.normal(kb1, (inner_dim,), dtype=jnp.float32) * 0.1,
        # BatchNorm2d default init: gamma=1, beta=0.
        "gamma": jnp.ones((inner_dim,), dtype=jnp.float32),
        "beta": jnp.zeros((inner_dim,), dtype=jnp.float32),
        "w2": jax.random.normal(kw2, (out_dim, inner_dim), dtype=jnp.float32) * 0.1,
        "b2": jax.random.normal(kb2, (out_dim,), dtype=jnp.float32) * 0.1,
    }

    y = mlp2d_forward(x, params)
    y = jax.block_until_ready(y)

    y_ref = mlp2d_reference(x, params)
    assert y.shape == (N, out_dim, H, W)
    assert jnp.allclose(y, y_ref, atol=1e-4, rtol=1e-4), "mismatch vs reference"

    print("KERNEL_OK")
</pallas_src>

<mosaic_0001>
module attributes {stable_mosaic.version = 11 : i64} {
  func.func @_stage1_kernel(%arg0: i32, %arg1: memref<512x128xf32, #tpu.memory_space<vmem>>, %arg2: memref<128x128xf32, #tpu.memory_space<vmem>>, %arg3: memref<1x2x128xf32, #tpu.memory_space<vmem>>) attributes {dimension_semantics = [#tpu.dimension_semantics<parallel>], iteration_bounds = array<i64: 1>, scalar_prefetch = 0 : i64, scratch_operands = 0 : i64, tpu.core_type = #tpu.core_type<tc>, window_params = [{transform_indices = @transform_0, window_bounds = array<i64: 512, 128>}, {pipeline_mode = #tpu.pipeline_mode<synchronous>, transform_indices = @transform_1, window_bounds = array<i64: 128, 128>}, {transform_indices = @transform_2, window_bounds = array<i64: 1, 2, 128>}]} {
    %c0 = arith.constant 0 : index
    %c0_0 = arith.constant 0 : index
    %0 = vector.load %arg1[%c0, %c0_0] : memref<512x128xf32, #tpu.memory_space<vmem>>, vector<512x128xf32>
    %c0_1 = arith.constant 0 : index
    %c0_2 = arith.constant 0 : index
    %1 = vector.load %arg2[%c0_1, %c0_2] : memref<128x128xf32, #tpu.memory_space<vmem>>, vector<128x128xf32>
    %cst = arith.constant dense<0.000000e+00> : vector<512x128xf32>
    %2 = tpu.matmul %0, %1, %cst {dimension_numbers = #tpu.dot_dimension_numbers<[1], [0], [0], [1], [0, 0, 1, 1], [], []>} : vector<512x128xf32>, vector<128x128xf32>, vector<512x128xf32> -> vector<512x128xf32>
    %cst_3 = arith.constant dense<0.000000e+00> : vector<128xf32>
    %3 = vector.multi_reduction <add>, %2, %cst_3 [0] : vector<512x128xf32> to vector<128xf32>
    %4 = vector.shape_cast %3 : vector<128xf32> to vector<1x128xf32>
    %5 = arith.mulf %2, %2 : vector<512x128xf32>
    %cst_4 = arith.constant dense<0.000000e+00> : vector<128xf32>
    %6 = vector.multi_reduction <add>, %5, %cst_4 [0] : vector<512x128xf32> to vector<128xf32>
    %7 = vector.shape_cast %6 : vector<128xf32> to vector<1x128xf32>
    %8 = tpu.concatenate %4, %7 in 0 : vector<1x128xf32>, vector<1x128xf32> -> vector<2x128xf32>
    %9 = vector.shape_cast %8 : vector<2x128xf32> to vector<1x2x128xf32>
    %c0_5 = arith.constant 0 : index
    %c0_6 = arith.constant 0 : index
    %c0_7 = arith.constant 0 : index
    %10 = vector.load %arg3[%c0_5, %c0_6, %c0_7] : memref<1x2x128xf32, #tpu.memory_space<vmem>>, vector<1x2x128xf32>
    tpu.vector_store %arg3[%c0_5, %c0_6, %c0_7], %9 {strides = array<i32>} : memref<1x2x128xf32, #tpu.memory_space<vmem>>, vector<1x2x128xf32>,
    return
  }
  func.func @transform_0(%arg0: i32) -> (i32, i32) {
    %c0_i32 = arith.constant 0 : i32
    %c0_i32_0 = arith.constant 0 : i32
    return %arg0, %c0_i32 : i32, i32
  }
  func.func @transform_1(%arg0: i32) -> (i32, i32) {
    %c0_i32 = arith.constant 0 : i32
    %c0_i32_0 = arith.constant 0 : i32
    %c0_i32_1 = arith.constant 0 : i32
    return %c0_i32, %c0_i32_0 : i32, i32
  }
  func.func @transform_2(%arg0: i32) -> (i32, i32, i32) {
    %c0_i32 = arith.constant 0 : i32
    %c0_i32_0 = arith.constant 0 : i32
    %c0_i32_1 = arith.constant 0 : i32
    return %arg0, %c0_i32, %c0_i32_0 : i32, i32, i32
  }
}

</mosaic_0001>

<llo_original>
// kernel: tpu_custom_call.1
$region0: #{tpu_custom_call.1}
  #allocation0 [shape = 'u32[]', space=smem, size = 0x4, offset = 0x4, fixed_abs, tag = 'smem constant byte address 0x4 - core index']
  #allocation1 [shape = 'u32[144,128]{1,0:T(1,128)}', space=vmem, size = 0x12000, scoped, tag = 'internal scratch']
  %s0 = inlined_call_operand.hbm [shape: f32[512,128], index: 0, kind: input, shape index: {}]
  %s1 = inlined_call_operand.hbm [shape: f32[128,128], index: 1, kind: input, shape index: {}]
  %s2 = inlined_call_operand.hbm [shape: f32[1,2,128], index: 2, kind: output, shape index: {}]
  %s3 = sld [smem:[#allocation0]]
  $region26: #{tpu_custom_call.1} parent=0
    _
  %s5 = ssub.s32 1, %s3
  %s6 = scalar_select 0, %s5, %s3
  $region1: #{tpu_custom_call.1} parent=0
    #allocation2 [shape = 'u8[262144]{0}', space=vmem, size = 0x40000, scoped, tag = 'input window, operand 0, single buffered']
    #allocation3 [shape = 's32[1]{0}', space=sflag, size = 0x4, scoped, tag = 'scoped memory for tpu_custom_call.1']
    #allocation4 [shape = 's32[1]{0}', space=sflag, size = 0x4, scoped, tag = 'scoped memory for tpu_custom_call.1']
    #allocation5 [shape = 'u8[65536]{0}', space=vmem, size = 0x10000, scoped, tag = 'input window, operand 1, single buffered']
    #allocation6 [shape = 's32[1]{0}', space=sflag, size = 0x4, scoped, tag = 'scoped memory for tpu_custom_call.1']
    #allocation7 [shape = 'u8[1024]{0}', space=vmem, size = 0x400, scoped, tag = 'output window, operand 0, single buffered']
    %7 = vsyncpa [#allocation3], 0
    %8 = vsyncpa [#allocation6], 0
    %9 = vsyncpa [#allocation4], 0
    // Predicated region
    $region2: #{tpu_custom_call.1} parent=1 // pred_check
      _
    $region3: #{tpu_custom_call.1} parent=1 // pred_check_branch
      %11 = sbr.rel (0) target = $region5
    $region4: #{tpu_custom_call.1} parent=1 // pred_region
      %s13 = ssub.s32 8192, 8192
      %14 = vsyncadd [#allocation3], %s13
      %s15 = sshll.u32 [#allocation2], 4
      %s16 = int_to_ptr.vmem [resolvable:$true] %s15
      %21 = dma.hbm_to_vmem [thread:$0]  %s0, 8192, %s16, [#allocation3], 128, 128, 8
    $region5: #{tpu_custom_call.1} parent=1 // pred_fallthru
      _
    // Predicated region
    $region6: #{tpu_custom_call.1} parent=1 // pred_check
      _
    $region7: #{tpu_custom_call.1} parent=1 // pred_check_branch
      %23 = sbr.rel (0) target = $region9
    $region8: #{tpu_custom_call.1} parent=1 // pred_region
      %s25 = ssub.s32 2048, 2048
      %26 = vsyncadd [#allocation6], %s25
      %s27 = sshll.u32 [#allocation5], 4
      %s28 = int_to_ptr.vmem [resolvable:$true] %s27
      %33 = dma.hbm_to_vmem [thread:$0]  %s1, 2048, %s28, [#allocation6], 128, 128, 8
    $region9: #{tpu_custom_call.1} parent=1 // pred_fallthru
      _
    // Predicated region
    $region10: #{tpu_custom_call.1} parent=1 // pred_check
      _
    $region11: #{tpu_custom_call.1} parent=1 // pred_check_branch
      %35 = sbr.rel (0) target = $region13
    $region12: #{tpu_custom_call.1} parent=1 // pred_region
      %36 = dma.done [#allocation3], 8192
    $region13: #{tpu_custom_call.1} parent=1 // pred_fallthru
      _
    // Predicated region
    $region14: #{tpu_custom_call.1} parent=1 // pred_check
      _
    $region15: #{tpu_custom_call.1} parent=1 // pred_check_branch
      %38 = sbr.rel (0) target = $region17
    $region16: #{tpu_custom_call.1} parent=1 // pred_region
      %39 = dma.done [#allocation6], 2048
    $region17: #{tpu_custom_call.1} parent=1 // pred_fallthru
      _
    %v40 = vld [vmem:[#allocation2] sm:$0xff]
    %v41 = vld [vmem:[#allocation2 + $0x8] sm:$0xff]
    %v42 = vld [vmem:[#allocation2 + $0x10] sm:$0xff]
    %v43 = vld [vmem:[#allocation2 + $0x18] sm:$0xff]
    %v44 = vld [vmem:[#allocation2 + $0x20] sm:$0xff]
    %v45 = vld [vmem:[#allocation2 + $0x28] sm:$0xff]
    %v46 = vld [vmem:[#allocation2 + $0x30] sm:$0xff]
    %v47 = vld [vmem:[#allocation2 + $0x38] sm:$0xff]
    %v48 = vld [vmem:[#allocation2 + $0x40] sm:$0xff]
    %v49 = vld [vmem:[#allocation2 + $0x48] sm:$0xff]
    %v50 = vld [vmem:[#allocation2 + $0x50] sm:$0xff]
    %v51 = vld [vmem:[#allocation2 + $0x58] sm:$0xff]
    %v52 = vld [vmem:[#allocation2 + $0x60] sm:$0xff]
    %v53 = vld [vmem:[#allocation2 + $0x68] sm:$0xff]
    %v54 = vld [vmem:[#allocation2 + $0x70] sm:$0xff]
    %v55 = vld [vmem:[#allocation2 + $0x78] sm:$0xff]
    %v56 = vld [vmem:[#allocation2 + $0x80] sm:$0xff]
    %v57 = vld [vmem:[#allocation2 + $0x88] sm:$0xff]
    %v58 = vld [vmem:[#allocation2 + $0x90] sm:$0xff]
    %v59 = vld [vmem:[#allocation2 + $0x98] sm:$0xff]
    %v60 = vld [vmem:[#allocation2 + $0xa0] sm:$0xff]
    %v61 = vld [vmem:[#allocation2 + $0xa8] sm:$0xff]
    %v62 = vld [vmem:[#allocation2 + $0xb0] sm:$0xff]
    %v63 = vld [vmem:[#allocation2 + $0xb8] sm:$0xff]
    %v64 = vld [vmem:[#allocation2 + $0xc0] sm:$0xff]
    %v65 = vld [vmem:[#allocation2 + $0xc8] sm:$0xff]
    %v66 = vld [vmem:[#allocation2 + $0xd0] sm:$0xff]
    %v67 = vld [vmem:[#allocation2 + $0xd8] sm:$0xff]
    %v68 = vld [vmem:[#allocation2 + $0xe0] sm:$0xff]
    %v69 = vld [vmem:[#allocation2 + $0xe8] sm:$0xff]
    %v70 = vld [vmem:[#allocation2 + $0xf0] sm:$0xff]
    %v71 = vld [vmem:[#allocation2 + $0xf8] sm:$0xff]
    %v72 = vld [vmem:[#allocation2 + $0x100] sm:$0xff]
    %v73 = vld [vmem:[#allocation2 + $0x108] sm:$0xff]
    %v74 = vld [vmem:[#allocation2 + $0x110] sm:$0xff]
    %v75 = vld [vmem:[#allocation2 + $0x118] sm:$0xff]
    %v76 = vld [vmem:[#allocation2 + $0x120] sm:$0xff]
    %v77 = vld [vmem:[#allocation2 + $0x128] sm:$0xff]
    %v78 = vld [vmem:[#allocation2 + $0x130] sm:$0xff]
    %v79 = vld [vmem:[#allocation2 + $0x138] sm:$0xff]
    %v80 = vld [vmem:[#allocation2 + $0x140] sm:$0xff]
    %v81 = vld [vmem:[#allocation2 + $0x148] sm:$0xff]
    %v82 = vld [vmem:[#allocation2 + $0x150] sm:$0xff]
    %v83 = vld [vmem:[#allocation2 + $0x158] sm:$0xff]
    %v84 = vld [vmem:[#allocation2 + $0x160] sm:$0xff]
    %v85 = vld [vmem:[#allocation2 + $0x168] sm:$0xff]
    %v86 = vld [vmem:[#allocation2 + $0x170] sm:$0xff]
    %v87 = vld [vmem:[#allocation2 + $0x178] sm:$0xff]
    %v88 = vld [vmem:[#allocation2 + $0x180] sm:$0xff]
    %v89 = vld [vmem:[#allocation2 + $0x188] sm:$0xff]
    %v90 = vld [vmem:[#allocation2 + $0x190] sm:$0xff]
    %v91 = vld [vmem:[#allocation2 + $0x198] sm:$0xff]
    %v92 = vld [vmem:[#allocation2 + $0x1a0] sm:$0xff]
    %v93 = vld [vmem:[#allocation2 + $0x1a8] sm:$0xff]
    %v94 = vld [vmem:[#allocation2 + $0x1b0] sm:$0xff]
    %v95 = vld [vmem:[#allocation2 + $0x1b8] sm:$0xff]
    %v96 = vld [vmem:[#allocation2 + $0x1c0] sm:$0xff]
    %v97 = vld [vmem:[#allocation2 + $0x1c8] sm:$0xff]
    %v98 = vld [vmem:[#allocation2 + $0x1d0] sm:$0xff]
    %v99 = vld [vmem:[#allocation2 + $0x1d8] sm:$0xff]
    %v100 = vld [vmem:[#allocation2 + $0x1e0] sm:$0xff]
    %v101 = vld [vmem:[#allocation2 + $0x1e8] sm:$0xff]
    %v102 = vld [vmem:[#allocation2 + $0x1f0] sm:$0xff]
    %v103 = vld [vmem:[#allocation2 + $0x1f8] sm:$0xff]
    %v104 = vld [vmem:[#allocation5] sm:$0xff]
    %v105 = vld [vmem:[#allocation5 + $0x8] sm:$0xff]
    %v106 = vld [vmem:[#allocation5 + $0x10] sm:$0xff]
    %v107 = vld [vmem:[#allocation5 + $0x18] sm:$0xff]
    %v108 = vld [vmem:[#allocation5 + $0x20] sm:$0xff]
    %v109 = vld [vmem:[#allocation5 + $0x28] sm:$0xff]
    %v110 = vld [vmem:[#allocation5 + $0x30] sm:$0xff]
    %v111 = vld [vmem:[#allocation5 + $0x38] sm:$0xff]
    %v112 = vld [vmem:[#allocation5 + $0x40] sm:$0xff]
    %v113 = vld [vmem:[#allocation5 + $0x48] sm:$0xff]
    %v114 = vld [vmem:[#allocation5 + $0x50] sm:$0xff]
    %v115 = vld [vmem:[#allocation5 + $0x58] sm:$0xff]
    %v116 = vld [vmem:[#allocation5 + $0x60] sm:$0xff]
    %v117 = vld [vmem:[#allocation5 + $0x68] sm:$0xff]
    %v118 = vld [vmem:[#allocation5 + $0x70] sm:$0xff]
    %v119 = vld [vmem:[#allocation5 + $0x78] sm:$0xff]
    %120 = vmatprep.subr.mxu0 0.0
    %121 = vmatpush1.msra.mxu0 %v104
    %122 = vmatprep.subr.mxu0 0.0
    %123 = vmatpush1.msra.mxu0 %v105
    %124 = vmatprep.subr.mxu0 0.0
    %125 = vmatpush1.msra.mxu0 %v106
    %126 = vmatprep.subr.mxu0 0.0
    %127 = vmatpush1.msra.mxu0 %v107
    %128 = vmatprep.subr.mxu0 0.0
    %129 = vmatpush1.msra.mxu0 %v108
    %130 = vmatprep.subr.mxu0 0.0
    %131 = vmatpush1.msra.mxu0 %v109
    %132 = vmatprep.subr.mxu0 0.0
    %133 = vmatpush1.msra.mxu0 %v110
    %134 = vmatprep.subr.mxu0 0.0
    %135 = vmatpush1.msra.mxu0 %v111
    %136 = vmatprep.subr.mxu0 0.0
    %137 = vmatpush1.msra.mxu0 %v112
    %138 = vmatprep.subr.mxu0 0.0
    %139 = vmatpush1.msra.mxu0 %v113
    %140 = vmatprep.subr.mxu0 0.0
    %141 = vmatpush1.msra.mxu0 %v114
    %142 = vmatprep.subr.mxu0 0.0
    %143 = vmatpush1.msra.mxu0 %v115
    %144 = vmatprep.subr.mxu0 0.0
    %145 = vmatpush1.msra.mxu0 %v116
    %146 = vmatprep.subr.mxu0 0.0
    %147 = vmatpush1.msra.mxu0 %v117
    %148 = vmatprep.subr.mxu0 0.0
    %149 = vmatpush1.msra.mxu0 %v118
    %150 = vmatprep.subr.mxu0 0.0
    %151 = vmatpush1.msra.mxu0 %v119
    %152 = vmatprep.subr.mxu0 0.0
    %153 = vmatpush1.msra.mxu0 0.0
    %154 = vmatprep.subr.mxu0 0.0
    %155 = vmatpush1.msra.mxu0 0.0
    %156 = vmatprep.subr.mxu0 0.0
    %157 = vmatpush1.msra.mxu0 0.0
    %158 = vmatprep.subr.mxu0 0.0
    %159 = vmatpush1.msra.mxu0 0.0
    %160 = vmatprep.subr.mxu0 0.0
    %161 = vmatpush1.msra.mxu0 0.0
    %162 = vmatprep.subr.mxu0 0.0
    %163 = vmatpush1.msra.mxu0 0.0
    %164 = vmatprep.subr.mxu0 0.0
    %165 = vmatpush1.msra.mxu0 0.0
    %166 = vmatprep.subr.mxu0 0.0
    %167 = vmatpush1.msra.mxu0 0.0
    %168 = vmatprep.subr.mxu0 0.0
    %169 = vmatpush1.msra.mxu0 0.0
    %170 = vmatprep.subr.mxu0 0.0
    %171 = vmatpush1.msra.mxu0 0.0
    %172 = vmatprep.subr.mxu0 0.0
    %173 = vmatpush1.msra.mxu0 0.0
    %174 = vmatprep.subr.mxu0 0.0
    %175 = vmatpush1.msra.mxu0 0.0
    %176 = vmatprep.subr.mxu0 0.0
    %177 = vmatpush1.msra.mxu0 0.0
    %178 = vmatprep.subr.mxu0 0.0
    %179 = vmatpush1.msra.mxu0 0.0
    %180 = vmatprep.subr.mxu0 0.0
    %181 = vmatpush1.msra.mxu0 0.0
    %182 = vmatprep.subr.mxu0 0.0
    %183 = vmatpush1.msra.mxu0 0.0
    %184 = vmatprep.mubr.f32.mxu0 0.0
    %185 = vmatmul.mubr.f32.gmra.mrb[0].mxu0 %v40
    %v186 = vpop.f32.mrb[0].mxu0
    %v187 = vadd.f32 0.0, %v186
    %v188 = vpop.f32.mrb[0].mxu0
    %189 = vmatprep.mubr.f32.mxu0 0.0
    %190 = vmatmul.mubr.f32.gmra.mrb[0].mxu0 %v41
    %v191 = vpop.f32.mrb[0].mxu0
    %v192 = vadd.f32 0.0, %v191
    %v193 = vpop.f32.mrb[0].mxu0
    %194 = vmatprep.mubr.f32.mxu0 0.0
    %195 = vmatmul.mubr.f32.gmra.mrb[0].mxu0 %v42
    %v196 = vpop.f32.mrb[0].mxu0
    %v197 = vadd.f32 0.0, %v196
    %v198 = vpop.f32.mrb[0].mxu0
    %199 = vmatprep.mubr.f32.mxu0 0.0
    %200 = vmatmul.mubr.f32.gmra.mrb[0].mxu0 %v43
    %v201 = vpop.f32.mrb[0].mxu0
    %v202 = vadd.f32 0.0, %v201
    %v203 = vpop.f32.mrb[0].mxu0
    %204 = vmatprep.mubr.f32.mxu0 0.0
    %205 = vmatmul.mubr.f32.gmra.mrb[0].mxu0 %v44
    %v206 = vpop.f32.mrb[0].mxu0
    %v207 = vadd.f32 0.0, %v206
    %v208 = vpop.f32.mrb[0].mxu0
    %209 = vmatprep.mubr.f32.mxu0 0.0
    %210 = vmatmul.mubr.f32.gmra.mrb[0].mxu0 %v45
    %v211 = vpop.f32.mrb[0].mxu0
    %v212 = vadd.f32 0.0, %v211
    %v213 = vpop.f32.mrb[0].mxu0
    %214 = vmatprep.mubr.f32.mxu0 0.0
    %215 = vmatmul.mubr.f32.gmra.mrb[0].mxu0 %v46
    %v216 = vpop.f32.mrb[0].mxu0
    %v217 = vadd.f32 0.0, %v216
    %v218 = vpop.f32.mrb[0].mxu0
    %219 = vmatprep.mubr.f32.mxu0 0.0
    %220 = vmatmul.mubr.f32.gmra.mrb[0].mxu0 %v47
    %v221 = vpop.f32.mrb[0].mxu0
    %v222 = vadd.f32 0.0, %v221
    %v223 = vpop.f32.mrb[0].mxu0
    %224 = vmatprep.mubr.f32.mxu0 0.0
    %225 = vmatmul.mubr.f32.gmra.mrb[0].mxu0 %v48
    %v226 = vpop.f32.mrb[0].mxu0
    %v227 = vadd.f32 0.0, %v226
    %v228 = vpop.f32.mrb[0].mxu0
    %229 = vmatprep.mubr.f32.mxu0 0.0
    %230 = vmatmul.mubr.f32.gmra.mrb[0].mxu0 %v49
    %v231 = vpop.f32.mrb[0].mxu0
    %v232 = vadd.f32 0.0, %v231
    %v233 = vpop.f32.mrb[0].mxu0
    %234 = vmatprep.mubr.f32.mxu0 0.0
    %235 = vmatmul.mubr.f32.gmra.mrb[0].mxu0 %v50
    %v236 = vpop.f32.mrb[0].mxu0
    %v237 = vadd.f32 0.0, %v236
    %v238 = vpop.f32.mrb[0].mxu0
    %239 = vmatprep.mubr.f32.mxu0 0.0
    %240 = vmatmul.mubr.f32.gmra.mrb[0].mxu0 %v51
    %v241 = vpop.f32.mrb[0].mxu0
    %v242 = vadd.f32 0.0, %v241
    %v243 = vpop.f32.mrb[0].mxu0
    %244 = vmatprep.mubr.f32.mxu0 0.0
    %245 = vmatmul.mubr.f32.gmra.mrb[0].mxu0 %v52
    %v246 = vpop.f32.mrb[0].mxu0
    %v247 = vadd.f32 0.0, %v246
    %v248 = vpop.f32.mrb[0].mxu0
    %249 = vmatprep.mubr.f32.mxu0 0.0
    %250 = vmatmul.mubr.f32.gmra.mrb[0].mxu0 %v53
    %v251 = vpop.f32.mrb[0].mxu0
    %v252 = vadd.f32 0.0, %v251
    %v253 = vpop.f32.mrb[0].mxu0
    %254 = vmatprep.mubr.f32.mxu0 0.0
    %255 = vmatmul.mubr.f32.gmra.mrb[0].mxu0 %v54
    %v256 = vpop.f32.mrb[0].mxu0
    %v257 = vadd.f32 0.0, %v256
    %v258 = vpop.f32.mrb[0].mxu0
    %259 = vmatprep.mubr.f32.mxu0 0.0
    %260 = vmatmul.mubr.f32.gmra.mrb[0].mxu0 %v55
    %v261 = vpop.f32.mrb[0].mxu0
    %v262 = vadd.f32 0.0, %v261
    %v263 = vpop.f32.mrb[0].mxu0
    %264 = vmatprep.mubr.f32.mxu0 0.0
    %265 = vmatmul.mubr.f32.gmra.mrb[0].mxu0 %v56
    %v266 = vpop.f32.mrb[0].mxu0
    %v267 = vadd.f32 0.0, %v266
    %v268 = vpop.f32.mrb[0].mxu0
    %269 = vmatprep.mubr.f32.mxu0 0.0
    %270 = vmatmul.mubr.f32.gmra.mrb[0].mxu0 %v57
    %v271 = vpop.f32.mrb[0].mxu0
    %v272 = vadd.f32 0.0, %v271
    %v273 = vpop.f32.mrb[0].mxu0
    %274 = vmatprep.mubr.f32.mxu0 0.0
    %275 = vmatmul.mubr.f32.gmra.mrb[0].mxu0 %v58
    %v276 = vpop.f32.mrb[0].mxu0
    %v277 = vadd.f32 0.0, %v276
    %v278 = vpop.f32.mrb[0].mxu0
    %279 = vmatprep.mubr.f32.mxu0 0.0
    %280 = vmatmul.mubr.f32.gmra.mrb[0].mxu0 %v59
    %v281 = vpop.f32.mrb[0].mxu0
    %v282 = vadd.f32 0.0, %v281
    %v283 = vpop.f32.mrb[0].mxu0
    %284 = vmatprep.mubr.f32.mxu0 0.0
    %285 = vmatmul.mubr.f32.gmra.mrb[0].mxu0 %v60
    %v286 = vpop.f32.mrb[0].mxu0
    %v287 = vadd.f32 0.0, %v286
    %v288 = vpop.f32.mrb[0].mxu0
    %289 = vmatprep.mubr.f32.mxu0 0.0
    %290 = vmatmul.mubr.f32.gmra.mrb[0].mxu0 %v61
    %v291 = vpop.f32.mrb[0].mxu0
    %v292 = vadd.f32 0.0, %v291
    %v293 = vpop.f32.mrb[0].mxu0
    %294 = vmatprep.mubr.f32.mxu0 0.0
    %295 = vmatmul.mubr.f32.gmra.mrb[0].mxu0 %v62
    %v296 = vpop.f32.mrb[0].mxu0
    %v297 = vadd.f32 0.0, %v296
    %v298 = vpop.f32.mrb[0].mxu0
    %299 = vmatprep.mubr.f32.mxu0 0.0
    %300 = vmatmul.mubr.f32.gmra.mrb[0].mxu0 %v63
    %v301 = vpop.f32.mrb[0].mxu0
    %v302 = vadd.f32 0.0, %v301
    %v303 = vpop.f32.mrb[0].mxu0
    %304 = vmatprep.mubr.f32.mxu0 0.0
    %305 = vmatmul.mubr.f32.gmra.mrb[0].mxu0 %v64
    %v306 = vpop.f32.mrb[0].mxu0
    %v307 = vadd.f32 0.0, %v306
    %v308 = vpop.f32.mrb[0].mxu0
    %309 = vmatprep.mubr.f32.mxu0 0.0
    %310 = vmatmul.mubr.f32.gmra.mrb[0].mxu0 %v65
    %v311 = vpop.f32.mrb[0].mxu0
    %v312 = vadd.f32 0.0, %v311
    %v313 = vpop.f32.mrb[0].mxu0
    %314 = vmatprep.mubr.f32.mxu0 0.0
    %315 = vmatmul.mubr.f32.gmra.mrb[0].mxu0 %v66
    %v316 = vpop.f32.mrb[0].mxu0
    %v317 = vadd.f32 0.0, %v316
    %v318 = vpop.f32.mrb[0].mxu0
    %319 = vmatprep.mubr.f32.mxu0 0.0
    %320 = vmatmul.mubr.f32.gmra.mrb[0].mxu0 %v67
    %v321 = vpop.f32.mrb[0].mxu0
    %v322 = vadd.f32 0.0, %v321
    %v323 = vpop.f32.mrb[0].mxu0
    %324 = vmatprep.mubr.f32.mxu0 0.0
    %325 = vmatmul.mubr.f32.gmra.mrb[0].mxu0 %v68
    %v326 = vpop.f32.mrb[0].mxu0
    %v327 = vadd.f32 0.0, %v326
    %v328 = vpop.f32.mrb[0].mxu0
    %329 = vmatprep.mubr.f32.mxu0 0.0
    %330 = vmatmul.mubr.f32.gmra.mrb[0].mxu0 %v69
    %v331 = vpop.f32.mrb[0].mxu0
    %v332 = vadd.f32 0.0, %v331
    %v333 = vpop.f32.mrb[0].mxu0
    %334 = vmatprep.mubr.f32.mxu0 0.0
    %335 = vmatmul.mubr.f32.gmra.mrb[0].mxu0 %v70
    %v336 = vpop.f32.mrb[0].mxu0
    %v337 = vadd.f32 0.0, %v336
    %v338 = vpop.f32.mrb[0].mxu0
    %339 = vmatprep.mubr.f32.mxu0 0.0
    %340 = vmatmul.mubr.f32.gmra.mrb[0].mxu0 %v71
    %v341 = vpop.f32.mrb[0].mxu0
    %v342 = vadd.f32 0.0, %v341
    %v343 = vpop.f32.mrb[0].mxu0
    %344 = vmatprep.mubr.f32.mxu0 0.0
    %345 = vmatmul.mubr.f32.gmra.mrb[0].mxu0 %v72
    %v346 = vpop.f32.mrb[0].mxu0
    %v347 = vadd.f32 0.0, %v346
    %v348 = vpop.f32.mrb[0].mxu0
    %349 = vmatprep.mubr.f32.mxu0 0.0
    %350 = vmatmul.mubr.f32.gmra.mrb[0].mxu0 %v73
    %v351 = vpop.f32.mrb[0].mxu0
    %v352 = vadd.f32 0.0, %v351
    %v353 = vpop.f32.mrb[0].mxu0
    %354 = vmatprep.mubr.f32.mxu0 0.0
    %355 = vmatmul.mubr.f32.gmra.mrb[0].mxu0 %v74
    %v356 = vpop.f32.mrb[0].mxu0
    %v357 = vadd.f32 0.0, %v356
    %v358 = vpop.f32.mrb[0].mxu0
    %359 = vmatprep.mubr.f32.mxu0 0.0
    %360 = vmatmul.mubr.f32.gmra.mrb[0].mxu0 %v75
    %v361 = vpop.f32.mrb[0].mxu0
    %v362 = vadd.f32 0.0, %v361
    %v363 = vpop.f32.mrb[0].mxu0
    %364 = vmatprep.mubr.f32.mxu0 0.0
    %365 = vmatmul.mubr.f32.gmra.mrb[0].mxu0 %v76
    %v366 = vpop.f32.mrb[0].mxu0
    %v367 = vadd.f32 0.0, %v366
    %v368 = vpop.f32.mrb[0].mxu0
    %369 = vmatprep.mubr.f32.mxu0 0.0
    %370 = vmatmul.mubr.f32.gmra.mrb[0].mxu0 %v77
    %v371 = vpop.f32.mrb[0].mxu0
    %v372 = vadd.f32 0.0, %v371
    %v373 = vpop.f32.mrb[0].mxu0
    %374 = vmatprep.mubr.f32.mxu0 0.0
    %375 = vmatmul.mubr.f32.gmra.mrb[0].mxu0 %v78
    %v376 = vpop.f32.mrb[0].mxu0
    %v377 = vadd.f32 0.0, %v376
    %v378 = vpop.f32.mrb[0].mxu0
    %379 = vmatprep.mubr.f32.mxu0 0.0
    %380 = vmatmul.mubr.f32.gmra.mrb[0].mxu0 %v79
    %v381 = vpop.f32.mrb[0].mxu0
    %v382 = vadd.f32 0.0, %v381
    %v383 = vpop.f32.mrb[0].mxu0
    %384 = vmatprep.mubr.f32.mxu0 0.0
    %385 = vmatmul.mubr.f32.gmra.mrb[0].mxu0 %v80
    %v386 = vpop.f32.mrb[0].mxu0
    %v387 = vadd.f32 0.0, %v386
    %v388 = vpop.f32.mrb[0].mxu0
    %389 = vmatprep.mubr.f32.mxu0 0.0
    %390 = vmatmul.mubr.f32.gmra.mrb[0].mxu0 %v81
    %v391 = vpop.f32.mrb[0].mxu0
    %v392 = vadd.f32 0.0, %v391
    %v393 = vpop.f32.mrb[0].mxu0
    %394 = vmatprep.mubr.f32.mxu0 0.0
    %395 = vmatmul.mubr.f32.gmra.mrb[0].mxu0 %v82
    %v396 = vpop.f32.mrb[0].mxu0
    %v397 = vadd.f32 0.0, %v396
    %v398 = vpop.f32.mrb[0].mxu0
    %399 = vmatprep.mubr.f32.mxu0 0.0
    %400 = vmatmul.mubr.f32.gmra.mrb[0].mxu0 %v83
    %v401 = vpop.f32.mrb[0].mxu0
    %v402 = vadd.f32 0.0, %v401
    %v403 = vpop.f32.mrb[0].mxu0
    %404 = vmatprep.mubr.f32.mxu0 0.0
    %405 = vmatmul.mubr.f32.gmra.mrb[0].mxu0 %v84
    %v406 = vpop.f32.mrb[0].mxu0
    %v407 = vadd.f32 0.0, %v406
    %v408 = vpop.f32.mrb[0].mxu0
    %409 = vmatprep.mubr.f32.mxu0 0.0
    %410 = vmatmul.mubr.f32.gmra.mrb[0].mxu0 %v85
    %v411 = vpop.f32.mrb[0].mxu0
    %v412 = vadd.f32 0.0, %v411
    %v413 = vpop.f32.mrb[0].mxu0
    %414 = vmatprep.mubr.f32.mxu0 0.0
    %415 = vmatmul.mubr.f32.gmra.mrb[0].mxu0 %v86
    %v416 = vpop.f32.mrb[0].mxu0
    %v417 = vadd.f32 0.0, %v416
    %v418 = vpop.f32.mrb[0].mxu0
    %419 = vmatprep.mubr.f32.mxu0 0.0
    %420 = vmatmul.mubr.f32.gmra.mrb[0].mxu0 %v87
    %v421 = vpop.f32.mrb[0].mxu0
    %v422 = vadd.f32 0.0, %v421
    %v423 = vpop.f32.mrb[0].mxu0
    %424 = vmatprep.mubr.f32.mxu0 0.0
    %425 = vmatmul.mubr.f32.gmra.mrb[0].mxu0 %v88
    %v426 = vpop.f32.mrb[0].mxu0
    %v427 = vadd.f32 0.0, %v426
    %v428 = vpop.f32.mrb[0].mxu0
    %429 = vmatprep.mubr.f32.mxu0 0.0
    %430 = vmatmul.mubr.f32.gmra.mrb[0].mxu0 %v89
    %v431 = vpop.f32.mrb[0].mxu0
    %v432 = vadd.f32 0.0, %v431
    %v433 = vpop.f32.mrb[0].mxu0
    %434 = vmatprep.mubr.f32.mxu0 0.0
    %435 = vmatmul.mubr.f32.gmra.mrb[0].mxu0 %v90
    %v436 = vpop.f32.mrb[0].mxu0
    %v437 = vadd.f32 0.0, %v436
    %v438 = vpop.f32.mrb[0].mxu0
    %439 = vmatprep.mubr.f32.mxu0 0.0
    %440 = vmatmul.mubr.f32.gmra.mrb[0].mxu0 %v91
    %v441 = vpop.f32.mrb[0].mxu0
    %v442 = vadd.f32 0.0, %v441
    %v443 = vpop.f32.mrb[0].mxu0
    %444 = vmatprep.mubr.f32.mxu0 0.0
    %445 = vmatmul.mubr.f32.gmra.mrb[0].mxu0 %v92
    %v446 = vpop.f32.mrb[0].mxu0
    %v447 = vadd.f32 0.0, %v446
    %v448 = vpop.f32.mrb[0].mxu0
    %449 = vmatprep.mubr.f32.mxu0 0.0
    %450 = vmatmul.mubr.f32.gmra.mrb[0].mxu0 %v93
    %v451 = vpop.f32.mrb[0].mxu0
    %v452 = vadd.f32 0.0, %v451
    %v453 = vpop.f32.mrb[0].mxu0
    %454 = vmatprep.mubr.f32.mxu0 0.0
    %455 = vmatmul.mubr.f32.gmra.mrb[0].mxu0 %v94
    %v456 = vpop.f32.mrb[0].mxu0
    %v457 = vadd.f32 0.0, %v456
    %v458 = vpop.f32.mrb[0].mxu0
    %459 = vmatprep.mubr.f32.mxu0 0.0
    %460 = vmatmul.mubr.f32.gmra.mrb[0].mxu0 %v95
    %v461 = vpop.f32.mrb[0].mxu0
    %v462 = vadd.f32 0.0, %v461
    %v463 = vpop.f32.mrb[0].mxu0
    %464 = vmatprep.mubr.f32.mxu0 0.0
    %465 = vmatmul.mubr.f32.gmra.mrb[0].mxu0 %v96
    %v466 = vpop.f32.mrb[0].mxu0
    %v467 = vadd.f32 0.0, %v466
    %v468 = vpop.f32.mrb[0].mxu0
    %469 = vmatprep.mubr.f32.mxu0 0.0
    %470 = vmatmul.mubr.f32.gmra.mrb[0].mxu0 %v97
    %v471 = vpop.f32.mrb[0].mxu0
    %v472 = vadd.f32 0.0, %v471
    %v473 = vpop.f32.mrb[0].mxu0
    %474 = vmatprep.mubr.f32.mxu0 0.0
    %475 = vmatmul.mubr.f32.gmra.mrb[0].mxu0 %v98
    %v476 = vpop.f32.mrb[0].mxu0
    %v477 = vadd.f32 0.0, %v476
    %v478 = vpop.f32.mrb[0].mxu0
    %479 = vmatprep.mubr.f32.mxu0 0.0
    %480 = vmatmul.mubr.f32.gmra.mrb[0].mxu0 %v99
    %v481 = vpop.f32.mrb[0].mxu0
    %v482 = vadd.f32 0.0, %v481
    %v483 = vpop.f32.mrb[0].mxu0
    %484 = vmatprep.mubr.f32.mxu0 0.0
    %485 = vmatmul.mubr.f32.gmra.mrb[0].mxu0 %v100
    %v486 = vpop.f32.mrb[0].mxu0
    %v487 = vadd.f32 0.0, %v486
    %v488 = vpop.f32.mrb[0].mxu0
    %489 = vmatprep.mubr.f32.mxu0 0.0
    %490 = vmatmul.mubr.f32.gmra.mrb[0].mxu0 %v101
    %v491 = vpop.f32.mrb[0].mxu0
    %v492 = vadd.f32 0.0, %v491
    %v493 = vpop.f32.mrb[0].mxu0
    %494 = vmatprep.mubr.f32.mxu0 0.0
    %495 = vmatmul.mubr.f32.gmra.mrb[0].mxu0 %v102
    %v496 = vpop.f32.mrb[0].mxu0
    %v497 = vadd.f32 0.0, %v496
    %v498 = vpop.f32.mrb[0].mxu0
    %499 = vmatprep.mubr.f32.mxu0 0.0
    %500 = vmatmul.mubr.f32.gmra.mrb[0].mxu0 %v103
    %v501 = vpop.f32.mrb[0].mxu0
    %v502 = vadd.f32 0.0, %v501
    %v503 = vpop.f32.mrb[0].mxu0
    %504 = vdwg.mxu0
    %v505 = vadd.f32 %v187, %v192
    %v506 = vadd.f32 %v505, %v197
    %v507 = vadd.f32 %v506, %v202
    %v508 = vadd.f32 %v507, %v207
    %v509 = vadd.f32 %v508, %v212
    %v510 = vadd.f32 %v509, %v217
    %v511 = vadd.f32 %v510, %v222
    %v512 = vadd.f32 %v511, %v227
    %v513 = vadd.f32 %v512, %v232
    %v514 = vadd.f32 %v513, %v237
    %v515 = vadd.f32 %v514, %v242
    %v516 = vadd.f32 %v515, %v247
    %v517 = vadd.f32 %v516, %v252
    %v518 = vadd.f32 %v517, %v257
    %v519 = vadd.f32 %v518, %v262
    %v520 = vadd.f32 %v519, %v267
    %v521 = vadd.f32 %v520, %v272
    %v522 = vadd.f32 %v521, %v277
    %v523 = vadd.f32 %v522, %v282
    %v524 = vadd.f32 %v523, %v287
    %v525 = vadd.f32 %v524, %v292
    %v526 = vadd.f32 %v525, %v297
    %v527 = vadd.f32 %v526, %v302
    %v528 = vadd.f32 %v527, %v307
    %v529 = vadd.f32 %v528, %v312
    %v530 = vadd.f32 %v529, %v317
    %v531 = vadd.f32 %v530, %v322
    %v532 = vadd.f32 %v531, %v327
    %v533 = vadd.f32 %v532, %v332
    %v534 = vadd.f32 %v533, %v337
    %v535 = vadd.f32 %v534, %v342
    %v536 = vadd.f32 %v535, %v347
    %v537 = vadd.f32 %v536, %v352
    %v538 = vadd.f32 %v537, %v357
    %v539 = vadd.f32 %v538, %v362
    %v540 = vadd.f32 %v539, %v367
    %v541 = vadd.f32 %v540, %v372
    %v542 = vadd.f32 %v541, %v377
    %v543 = vadd.f32 %v542, %v382
    %v544 = vadd.f32 %v543, %v387
    %v545 = vadd.f32 %v544, %v392
    %v546 = vadd.f32 %v545, %v397
    %v547 = vadd.f32 %v546, %v402
    %v548 = vadd.f32 %v547, %v407
    %v549 = vadd.f32 %v548, %v412
    %v550 = vadd.f32 %v549, %v417
    %v551 = vadd.f32 %v550, %v422
    %v552 = vadd.f32 %v551, %v427
    %v553 = vadd.f32 %v552, %v432
    %v554 = vadd.f32 %v553, %v437
    %v555 = vadd.f32 %v554, %v442
    %v556 = vadd.f32 %v555, %v447
    %v557 = vadd.f32 %v556, %v452
    %v558 = vadd.f32 %v557, %v457
    %v559 = vadd.f32 %v558, %v462
    %v560 = vadd.f32 %v559, %v467
    %v561 = vadd.f32 %v560, %v472
    %v562 = vadd.f32 %v561, %v477
    %v563 = vadd.f32 %v562, %v482
    %v564 = vadd.f32 %v563, %v487
    %v565 = vadd.f32 %v564, %v492
    %v566 = vadd.f32 %v565, %v497
    %v567 = vadd.f32 %v566, %v502
    %v568 = vrot.slane %v567, 4
    %v569 = vadd.f32 %v567, %v568
    %v570 = vrot.slane %v569, 2
    %v571 = vadd.f32 %v569, %v570
    %v572 = vrot.slane %v571, 1
    %v573 = vadd.f32 %v571, %v572
    %v574 = vmul.f32 %v187, %v187
    %v575 = vmul.f32 %v192, %v192
    %v576 = vmul.f32 %v197, %v197
    %v577 = vmul.f32 %v202, %v202
    %v578 = vmul.f32 %v207, %v207
    %v579 = vmul.f32 %v212, %v212
    %v580 = vmul.f32 %v217, %v217
    %v581 = vmul.f32 %v222, %v222
    %v582 = vmul.f32 %v227, %v227
    %v583 = vmul.f32 %v232, %v232
    %v584 = vmul.f32 %v237, %v237
    %v585 = vmul.f32 %v242, %v242
    %v586 = vmul.f32 %v247, %v247
    %v587 = vmul.f32 %v252, %v252
    %v588 = vmul.f32 %v257, %v257
    %v589 = vmul.f32 %v262, %v262
    %v590 = vmul.f32 %v267, %v267
    %v591 = vmul.f32 %v272, %v272
    %v592 = vmul.f32 %v277, %v277
    %v593 = vmul.f32 %v282, %v282
    %v594 = vmul.f32 %v287, %v287
    %v595 = vmul.f32 %v292, %v292
    %v596 = vmul.f32 %v297, %v297
    %v597 = vmul.f32 %v302, %v302
    %v598 = vmul.f32 %v307, %v307
    %v599 = vmul.f32 %v312, %v312
    %v600 = vmul.f32 %v317, %v317
    %v601 = vmul.f32 %v322, %v322
    %v602 = vmul.f32 %v327, %v327
    %v603 = vmul.f32 %v332, %v332
    %v604 = vmul.f32 %v337, %v337
    %v605 = vmul.f32 %v342, %v342
    %v606 = vmul.f32 %v347, %v347
    %v607 = vmul.f32 %v352, %v352
    %v608 = vmul.f32 %v357, %v357
    %v609 = vmul.f32 %v362, %v362
    %v610 = vmul.f32 %v367, %v367
    %v611 = vmul.f32 %v372, %v372
    %v612 = vmul.f32 %v377, %v377
    %v613 = vmul.f32 %v382, %v382
    %v614 = vmul.f32 %v387, %v387
    %v615 = vmul.f32 %v392, %v392
    %v616 = vmul.f32 %v397, %v397
    %v617 = vmul.f32 %v402, %v402
    %v618 = vmul.f32 %v407, %v407
    %v619 = vmul.f32 %v412, %v412
    %v620 = vmul.f32 %v417, %v417
    %v621 = vmul.f32 %v422, %v422
    %v622 = vmul.f32 %v427, %v427
    %v623 = vmul.f32 %v432, %v432
    %v624 = vmul.f32 %v437, %v437
    %v625 = vmul.f32 %v442, %v442
    %v626 = vmul.f32 %v447, %v447
    %v627 = vmul.f32 %v452, %v452
    %v628 = vmul.f32 %v457, %v457
    %v629 = vmul.f32 %v462, %v462
    %v630 = vmul.f32 %v467, %v467
    %v631 = vmul.f32 %v472, %v472
    %v632 = vmul.f32 %v477, %v477
    %v633 = vmul.f32 %v482, %v482
    %v634 = vmul.f32 %v487, %v487
    %v635 = vmul.f32 %v492, %v492
    %v636 = vmul.f32 %v497, %v497
    %v637 = vmul.f32 %v502, %v502
    %v638 = vadd.f32 %v574, %v575
    %v639 = vadd.f32 %v638, %v576
    %v640 = vadd.f32 %v639, %v577
    %v641 = vadd.f32 %v640, %v578
    %v642 = vadd.f32 %v641, %v579
    %v643 = vadd.f32 %v642, %v580
    %v644 = vadd.f32 %v643, %v581
    %v645 = vadd.f32 %v644, %v582
    %v646 = vadd.f32 %v645, %v583
    %v647 = vadd.f32 %v646, %v584
    %v648 = vadd.f32 %v647, %v585
    %v649 = vadd.f32 %v648, %v586
    %v650 = vadd.f32 %v649, %v587
    %v651 = vadd.f32 %v650, %v588
    %v652 = vadd.f32 %v651, %v589
    %v653 = vadd.f32 %v652, %v590
    %v654 = vadd.f32 %v653, %v591
    %v655 = vadd.f32 %v654, %v592
    %v656 = vadd.f32 %v655, %v593
    %v657 = vadd.f32 %v656, %v594
    %v658 = vadd.f32 %v657, %v595
    %v659 = vadd.f32 %v658, %v596
    %v660 = vadd.f32 %v659, %v597
    %v661 = vadd.f32 %v660, %v598
    %v662 = vadd.f32 %v661, %v599
    %v663 = vadd.f32 %v662, %v600
    %v664 = vadd.f32 %v663, %v601
    %v665 = vadd.f32 %v664, %v602
    %v666 = vadd.f32 %v665, %v603
    %v667 = vadd.f32 %v666, %v604
    %v668 = vadd.f32 %v667, %v605
    %v669 = vadd.f32 %v668, %v606
    %v670 = vadd.f32 %v669, %v607
    %v671 = vadd.f32 %v670, %v608
    %v672 = vadd.f32 %v671, %v609
    %v673 = vadd.f32 %v672, %v610
    %v674 = vadd.f32 %v673, %v611
    %v675 = vadd.f32 %v674, %v612
    %v676 = vadd.f32 %v675, %v613
    %v677 = vadd.f32 %v676, %v614
    %v678 = vadd.f32 %v677, %v615
    %v679 = vadd.f32 %v678, %v616
    %v680 = vadd.f32 %v679, %v617
    %v681 = vadd.f32 %v680, %v618
    %v682 = vadd.f32 %v681, %v619
    %v683 = vadd.f32 %v682, %v620
    %v684 = vadd.f32 %v683, %v621
    %v685 = vadd.f32 %v684, %v622
    %v686 = vadd.f32 %v685, %v623
    %v687 = vadd.f32 %v686, %v624
    %v688 = vadd.f32 %v687, %v625
    %v689 = vadd.f32 %v688, %v626
    %v690 = vadd.f32 %v689, %v627
    %v691 = vadd.f32 %v690, %v628
    %v692 = vadd.f32 %v691, %v629
    %v693 = vadd.f32 %v692, %v630
    %v694 = vadd.f32 %v693, %v631
    %v695 = vadd.f32 %v694, %v632
    %v696 = vadd.f32 %v695, %v633
    %v697 = vadd.f32 %v696, %v634
    %v698 = vadd.f32 %v697, %v635
    %v699 = vadd.f32 %v698, %v636
    %v700 = vadd.f32 %v699, %v637
    %v701 = vrot.slane %v700, 4
    %v702 = vadd.f32 %v700, %v701
    %v703 = vrot.slane %v702, 2
    %v704 = vadd.f32 %v702, %v703
    %v705 = vrot.slane %v704, 1
    %v706 = vadd.f32 %v704, %v705
    %vm707 = vcmask 1040384
    %v708 = vsel %vm707, %v573, %v706
    %709 = vst [vmem:[#allocation7] sm:$0x3] %v708
    // Predicated region
    $region18: #{tpu_custom_call.1} parent=1 // pred_check
      _
    $region19: #{tpu_custom_call.1} parent=1 // pred_check_branch
      %711 = sbr.rel (0) target = $region21
    $region20: #{tpu_custom_call.1} parent=1 // pred_region
      %s713 = ssub.s32 32, 32
      %714 = vsyncadd [#allocation4], %s713
      %s716 = sshll.u32 [#allocation7], 4
      %s717 = int_to_ptr.vmem [resolvable:$true] %s716
      %719 = dma.vmem_to_hbm [thread:$0]  %s717, 32, %s2, [#allocation4]
    $region21: #{tpu_custom_call.1} parent=1 // pred_fallthru
      _
    // Predicated region
    $region22: #{tpu_custom_call.1} parent=1 // pred_check
      _
    $region23: #{tpu_custom_call.1} parent=1 // pred_check_branch
      %721 = sbr.rel (0) target = $region25
    $region24: #{tpu_custom_call.1} parent=1 // pred_region
      %722 = dma.done [#allocation4], 32
    $region25: #{tpu_custom_call.1} parent=1 // pred_fallthru
      _
    %723 = vsyncpa [#allocation3], 1
    %724 = vsyncpa [#allocation6], 1
    %725 = vsyncpa [#allocation4], 1

</llo_original>
